<compile_context>
chip_gen: v6e
topology: v6e:2x2x1
jax: 0.10.0
libtpu: 0.0.40
codegen_flags: <defaults>
</compile_context>

<pallas_src>
import math
import functools

import jax
import jax.numpy as jnp
from jax import lax
from jax.experimental import pallas as pl
from jax.experimental.pallas import tpu as pltpu


# ----------------------------- small helpers ---------------------------------

def _pick_tile(n, target, align):
    """Largest tile that divides n, is <= target and a multiple of `align`.
    A full-extent tile (== n) is always legal regardless of alignment."""
    if n <= target:
        return n
    for d in range(min(target, n), 0, -1):
        if n % d == 0 and d % align == 0:
            return d
    return n


def _layer_norm(x, w, b, eps=1e-5):
    # x: (R, C) f32; w, b: (1, C)  -- matches F.layer_norm (biased variance, eps=1e-5)
    mu = jnp.mean(x, axis=-1, keepdims=True)
    xc = x - mu
    var = jnp.mean(xc * xc, axis=-1, keepdims=True)
    return xc * lax.rsqrt(var + eps) * w + b


def _erf(x):
    # Abramowitz & Stegun 7.1.26 (|err| < 1.5e-7).
    # TODO(synk): lax.erf has no Mosaic lowering rule, so exact (erf-based) GELU is
    #             realised with a short polynomial + one EUP exp instead.
    a1, a2, a3, a4, a5 = 0.254829592, -0.284496736, 1.421413741, -1.453152027, 1.061405429
    p = 0.3275911
    s = jnp.where(x >= 0.0, 1.0, -1.0)
    ax = jnp.abs(x)
    t = 1.0 / (1.0 + p * ax)
    poly = ((((a5 * t + a4) * t + a3) * t + a2) * t + a1) * t
    return s * (1.0 - poly * jnp.exp(-ax * ax))


def _gelu_exact(x):
    return 0.5 * x * (1.0 + _erf(x * (1.0 / math.sqrt(2.0))))


# ----------------------------- Pallas kernels --------------------------------

def _linear_kernel(*refs, has_ln, has_res, act):
    """out = [residual +] act( LN_opt(x) @ W + b ); bf16 matmul, f32 accumulate."""
    x_ref = refs[0]
    i = 1
    if has_ln:
        lnw_ref, lnb_ref = refs[i], refs[i + 1]
        i += 2
    w_ref, b_ref = refs[i], refs[i + 1]
    i += 2
    res_ref = refs[i] if has_res else None
    o_ref = refs[-1]

    x = x_ref[...].astype(jnp.float32)                       # (TM, K)
    if has_ln:
        # LN is recomputed per N-tile; cheap relative to the (K, TN) matmul.
        x = _layer_norm(x, lnw_ref[...], lnb_ref[...])
    y = jnp.dot(x.astype(jnp.bfloat16), w_ref[...],
                preferred_element_type=jnp.float32)          # MXU bf16 -> f32 acc
    y = y + b_ref[...]
    if act == "gelu":
        y = _gelu_exact(y)
    if has_res:
        y = y + res_ref[...].astype(jnp.float32)
    o_ref[...] = y.astype(o_ref.dtype)


def _attn_kernel(q_ref, k_ref, v_ref, o_ref, *, scale, tq):
    """Causal softmax(q k^T * scale) v for one (batch*head, q-row-tile) grid step."""
    q = q_ref[0].astype(jnp.bfloat16)                        # (TQ, hd)
    k = k_ref[0].astype(jnp.bfloat16)                        # (T,  hd)
    v = v_ref[0].astype(jnp.bfloat16)                        # (T,  hd)

    # Contract the head dim directly: no explicit transpose of k.
    s = lax.dot_general(q, k, (((1,), (1,)), ((), ())),
                        preferred_element_type=jnp.float32) * scale   # (TQ, T)

    row = lax.broadcasted_iota(jnp.int32, s.shape, 0) + pl.program_id(1) * tq
    col = lax.broadcasted_iota(jnp.int32, s.shape, 1)
    # -1e30 (not -inf) is safe: the diagonal is always unmasked for causal attention.
    s = jnp.where(col <= row, s, jnp.float32(-1e30))

    m = jnp.max(s, axis=-1, keepdims=True)
    p = jnp.exp(s - m)
    denom = jnp.sum(p, axis=-1, keepdims=True)
    p = p * pl.reciprocal(denom, approx=True)                # EUP slot, frees VALU

    o = jnp.dot(p.astype(jnp.bfloat16), v,
                preferred_element_type=jnp.float32)          # (TQ, hd)
    o_ref[0] = o.astype(o_ref.dtype)


def _lm_head_kernel(x_ref, lnfw_ref, lnfb_ref, w_ref, o_ref):
    """Final LayerNorm + tied lm head on the (already-sliced) last token, one vocab tile."""
    x = x_ref[0].astype(jnp.float32)                         # (1, C)
    h = _layer_norm(x, lnfw_ref[...], lnfb_ref[...]).astype(jnp.bfloat16)
    # logits_tile = h @ wte_tile^T, expressed as a contraction over C (wte never transposed).
    logits = lax.dot_general(h, w_ref[...], (((1,), (1,)), ((), ())),
                             preferred_element_type=jnp.float32)      # (1, TV)
    o_ref[0] = logits.astype(o_ref.dtype)


# ----------------------------- wrappers ---------------------------------------

def fused_linear(x, w, b, *, ln=None, residual=None, act="none",
                 out_dtype=jnp.float32, tm_target=256, tn_target=512):
    """Row- and N-tiled  [res +] act( LN_opt(x) @ W + b ).  x:(M,K) f32, W:(K,N) bf16."""
    M, K = x.shape
    N = w.shape[1]
    tm = _pick_tile(M, tm_target, 8)
    tn = _pick_tile(N, tn_target, 128)

    operands = [x]
    in_specs = [pl.BlockSpec((tm, K), lambda i, j: (i, 0))]
    if ln is not None:
        operands += [ln[0], ln[1]]
        in_specs += [pl.BlockSpec((1, K), lambda i, j: (0, 0)),
                     pl.BlockSpec((1, K), lambda i, j: (0, 0))]
    operands += [w, b]
    in_specs += [pl.BlockSpec((K, tn), lambda i, j: (0, j)),   # weight streams in N tiles
                 pl.BlockSpec((1, tn), lambda i, j: (0, j))]
    if residual is not None:
        operands.append(residual)
        in_specs.append(pl.BlockSpec((tm, tn), lambda i, j: (i, j)))

    return pl.pallas_call(
        functools.partial(_linear_kernel, has_ln=ln is not None,
                          has_res=residual is not None, act=act),
        out_shape=jax.ShapeDtypeStruct((M, N), out_dtype),
        grid=(M // tm, N // tn),
        in_specs=in_specs,
        out_specs=pl.BlockSpec((tm, tn), lambda i, j: (i, j)),
        compiler_params=pltpu.CompilerParams(
            dimension_semantics=("parallel", "parallel")),
    )(*operands)


def causal_attention(qkv, B, T, C, n_head):
    """qkv: (B*T, 3C) f32 -> y: (B*T, C) f32 (heads merged back)."""
    hd = C // n_head
    BH = B * n_head

    def split(part):   # (B*T, 3C) -> (B*H, T, hd); plain-XLA glue (same as torch view/transpose)
        return (qkv[:, part * C:(part + 1) * C]
                .reshape(B, T, n_head, hd).transpose(0, 2, 1, 3).reshape(BH, T, hd))

    q, k, v = split(0), split(1), split(2)
    tq = _pick_tile(T, 256, 8)

    y = pl.pallas_call(
        functools.partial(_attn_kernel, scale=1.0 / math.sqrt(hd), tq=tq),
        out_shape=jax.ShapeDtypeStruct((BH, T, hd), jnp.float32),
        grid=(BH, T // tq),
        in_specs=[pl.BlockSpec((1, tq, hd), lambda bh, qi: (bh, qi, 0)),
                  pl.BlockSpec((1, T, hd), lambda bh, qi: (bh, 0, 0)),
                  pl.BlockSpec((1, T, hd), lambda bh, qi: (bh, 0, 0))],
        out_specs=pl.BlockSpec((1, tq, hd), lambda bh, qi: (bh, qi, 0)),
        compiler_params=pltpu.CompilerParams(
            dimension_semantics=("parallel", "parallel")),
    )(q, k, v)
    return y.reshape(B, n_head, T, hd).transpose(0, 2, 1, 3).reshape(B * T, C)


def lm_head(x_last, lnf_w, lnf_b, wte, tv_target=2048):
    """x_last: (B, 1, C) f32 (last token only); wte: (V, C) bf16 (tied) -> (B, 1, V) f32."""
    B, _, C = x_last.shape
    V = wte.shape[0]
    tv = _pick_tile(V, tv_target, 128)
    return pl.pallas_call(
        _lm_head_kernel,
        out_shape=jax.ShapeDtypeStruct((B, 1, V), jnp.float32),
        grid=(B, V // tv),
        in_specs=[pl.BlockSpec((1, 1, C), lambda b, vj: (b, 0, 0)),
                  pl.BlockSpec((1, C), lambda b, vj: (0, 0)),
                  pl.BlockSpec((1, C), lambda b, vj: (0, 0)),
                  pl.BlockSpec((tv, C), lambda b, vj: (vj, 0))],   # vocab-tiled weight stream
        out_specs=pl.BlockSpec((1, 1, tv), lambda b, vj: (b, 0, vj)),
        compiler_params=pltpu.CompilerParams(
            dimension_semantics=("parallel", "parallel")),
    )(x_last, lnf_w, lnf_b, wte)


def gpt_forward(idx, params, cfg):
    """Equivalent of GPT.forward(idx, targets=None) -> logits of shape (B, 1, vocab)."""
    B, T = idx.shape
    C, H = cfg["n_embd"], cfg["n_head"]
    assert T <= cfg["block_size"]

    # Embedding lookup + positional embedding (gather stays in plain JAX).
    tok_emb = params["wte"][idx].astype(jnp.float32)          # (B, T, C)
    pos_emb = params["wpe"][:T].astype(jnp.float32)           # (T, C)
    x = (tok_emb + pos_emb[None, :, :]).reshape(B * T, C)     # residual stream, f32

    for blk in params["blocks"]:
        # ln1 -> qkv projection (fused)
        qkv = fused_linear(x, blk["w_attn"], blk["b_attn"],
                           ln=(blk["ln1_w"], blk["ln1_b"]))
        # causal multi-head attention
        y = causal_attention(qkv, B, T, C, H)
        # output projection + residual
        x = fused_linear(y, blk["w_attn_proj"], blk["b_attn_proj"], residual=x)
        # ln2 -> MLP up-projection + exact GELU (fused)
        h = fused_linear(x, blk["w_fc"], blk["b_fc"],
                         ln=(blk["ln2_w"], blk["ln2_b"]), act="gelu")
        # MLP down-projection + residual
        x = fused_linear(h, blk["w_mlp_proj"], blk["b_mlp_proj"], residual=x)

    # Final LayerNorm + tied lm head, last token only (inference path):
    # slice before the call so only one row per batch element is DMA'd.
    x_last = x.reshape(B, T, C)[:, T - 1:T, :]                # (B, 1, C)
    return lm_head(x_last, params["ln_f_w"], params["ln_f_b"], params["wte"])


# ----------------------------- parameters & reference -------------------------

def init_params(key, cfg):
    C, V, BS, L = cfg["n_embd"], cfg["vocab_size"], cfg["block_size"], cfg["n_layer"]
    keys = jax.random.split(key, 2 + 4 * L)

    def nrm(k, shape, std=0.02):
        # weights stored in bf16 (f32 accumulation happens inside the kernels)
        return (std * jax.random.normal(k, shape, dtype=jnp.float32)).astype(jnp.bfloat16)

    params = {
        "wte": nrm(keys[0], (V, C)),          # tied with lm_head; kept (V, C), never transposed
        "wpe": nrm(keys[1], (BS, C)),
        "ln_f_w": jnp.ones((1, C), jnp.float32),
        "ln_f_b": jnp.zeros((1, C), jnp.float32),
        "blocks": [],
    }
    std_proj = 0.02 / math.sqrt(2 * L)
    for li in range(L):
        k0, k1, k2, k3 = keys[2 + 4 * li: 2 + 4 * li + 4]
        params["blocks"].append({
            "ln1_w": jnp.ones((1, C), jnp.float32),
            "ln1_b": jnp.zeros((1, C), jnp.float32),
            "w_attn": nrm(k0, (C, 3 * C)),                    # (in, out), bf16
            "b_attn": jnp.zeros((1, 3 * C), jnp.float32),
            "w_attn_proj": nrm(k1, (C, C), std=std_proj),
            "b_attn_proj": jnp.zeros((1, C), jnp.float32),
            "ln2_w": jnp.ones((1, C), jnp.float32),
            "ln2_b": jnp.zeros((1, C), jnp.float32),
            "w_fc": nrm(k2, (C, 4 * C)),
            "b_fc": jnp.zeros((1, 4 * C), jnp.float32),
            "w_mlp_proj": nrm(k3, (4 * C, C), std=std_proj),
            "b_mlp_proj": jnp.zeros((1, C), jnp.float32),
        })
    return params


def ref_forward(idx, params, cfg):
    """Pure-JAX f32 reference (same bf16 weight values) matching the PyTorch forward."""
    B, T = idx.shape
    C, H = cfg["n_embd"], cfg["n_head"]
    hd = C // H
    f32 = lambda a: a.astype(jnp.float32)

    def ln(x, w, b):
        mu = x.mean(-1, keepdims=True)
        xc = x - mu
        var = (xc * xc).mean(-1, keepdims=True)
        return xc / jnp.sqrt(var + 1e-5) * w + b

    x = f32(params["wte"])[idx] + f32(params["wpe"])[:T][None]
    for blk in params["blocks"]:
        h = ln(x, blk["ln1_w"][0], blk["ln1_b"][0])
        qkv = h @ f32(blk["w_attn"]) + blk["b_attn"][0]
        q, k, v = jnp.split(qkv, 3, axis=-1)
        q = q.reshape(B, T, H, hd).transpose(0, 2, 1, 3)
        k = k.reshape(B, T, H, hd).transpose(0, 2, 1, 3)
        v = v.reshape(B, T, H, hd).transpose(0, 2, 1, 3)
        att = (q @ jnp.swapaxes(k, -1, -2)) / math.sqrt(hd)
        mask = jnp.tril(jnp.ones((T, T), dtype=bool))
        att = jnp.where(mask, att, -jnp.inf)
        att = jax.nn.softmax(att, axis=-1)
        y = (att @ v).transpose(0, 2, 1, 3).reshape(B, T, C)
        x = x + y @ f32(blk["w_attn_proj"]) + blk["b_attn_proj"][0]
        h = ln(x, blk["ln2_w"][0], blk["ln2_b"][0])
        h = jax.nn.gelu(h @ f32(blk["w_fc"]) + blk["b_fc"][0], approximate=False)
        x = x + h @ f32(blk["w_mlp_proj"]) + blk["b_mlp_proj"][0]
    x_last = ln(x[:, -1:, :], params["ln_f_w"][0], params["ln_f_b"][0])
    return x_last @ f32(params["wte"]).T


# ----------------------------- main -------------------------------------------

if __name__ == "__main__":
    cfg = dict(block_size=16, vocab_size=128, n_layer=2, n_head=4, n_embd=32)
    key = jax.random.PRNGKey(0)
    kp, ki = jax.random.split(key)
    params = init_params(kp, cfg)

    B, T = 2, 8
    idx = jax.random.randint(ki, (B, T), 0, cfg["vocab_size"], dtype=jnp.int32)

    logits = gpt_forward(idx, params, cfg)
    logits = jax.block_until_ready(logits)
    assert logits.shape == (B, 1, cfg["vocab_size"])

    ref = ref_forward(idx, params, cfg)
    max_err = float(jnp.max(jnp.abs(logits - ref)))
    assert bool(jnp.allclose(logits, ref, atol=1e-2, rtol=1e-2)), (
        f"mismatch vs reference (max abs err {max_err})")

    print("KERNEL_OK")
</pallas_src>

<mosaic_0001>
module attributes {stable_mosaic.version = 11 : i64} {
  func.func @_linear_kernel(%arg0: i32, %arg1: i32, %arg2: memref<16x32xf32, #tpu.memory_space<vmem>>, %arg3: memref<1x32xf32, #tpu.memory_space<vmem>>, %arg4: memref<1x32xf32, #tpu.memory_space<vmem>>, %arg5: memref<32x96xbf16, #tpu.memory_space<vmem>>, %arg6: memref<1x96xf32, #tpu.memory_space<vmem>>, %arg7: memref<16x96xf32, #tpu.memory_space<vmem>>) attributes {dimension_semantics = [#tpu.dimension_semantics<parallel>, #tpu.dimension_semantics<parallel>], iteration_bounds = array<i64: 1, 1>, scalar_prefetch = 0 : i64, scratch_operands = 0 : i64, tpu.core_type = #tpu.core_type<tc>, window_params = [{transform_indices = @transform_0, window_bounds = array<i64: 16, 32>}, {pipeline_mode = #tpu.pipeline_mode<synchronous>, transform_indices = @transform_1, window_bounds = array<i64: 1, 32>}, {pipeline_mode = #tpu.pipeline_mode<synchronous>, transform_indices = @transform_2, window_bounds = array<i64: 1, 32>}, {transform_indices = @transform_3, window_bounds = array<i64: 32, 96>}, {transform_indices = @transform_4, window_bounds = array<i64: 1, 96>}, {transform_indices = @transform_5, window_bounds = array<i64: 16, 96>}]} {
    %c0 = arith.constant 0 : index
    %c0_0 = arith.constant 0 : index
    %0 = vector.load %arg2[%c0, %c0_0] : memref<16x32xf32, #tpu.memory_space<vmem>>, vector<16x32xf32>
    %c0_1 = arith.constant 0 : index
    %c0_2 = arith.constant 0 : index
    %1 = vector.load %arg3[%c0_1, %c0_2] : memref<1x32xf32, #tpu.memory_space<vmem>>, vector<1x32xf32>
    %c0_3 = arith.constant 0 : index
    %c0_4 = arith.constant 0 : index
    %2 = vector.load %arg4[%c0_3, %c0_4] : memref<1x32xf32, #tpu.memory_space<vmem>>, vector<1x32xf32>
    %cst = arith.constant dense<0.000000e+00> : vector<16xf32>
    %3 = vector.multi_reduction <add>, %0, %cst [1] : vector<16x32xf32> to vector<16xf32>
    %4 = vector.shape_cast %3 : vector<16xf32> to vector<16x1xf32>
    %cst_5 = arith.constant 3.200000e+01 : f32
    %5 = vector.broadcast %cst_5 : f32 to vector<16x1xf32>
    %6 = arith.divf %4, %5 : vector<16x1xf32>
    %7 = vector.broadcast %6 : vector<16x1xf32> to vector<16x32xf32>
    %8 = arith.subf %0, %7 : vector<16x32xf32>
    %9 = arith.mulf %8, %8 : vector<16x32xf32>
    %cst_6 = arith.constant dense<0.000000e+00> : vector<16xf32>
    %10 = vector.multi_reduction <add>, %9, %cst_6 [1] : vector<16x32xf32> to vector<16xf32>
    %11 = vector.shape_cast %10 : vector<16xf32> to vector<16x1xf32>
    %cst_7 = arith.constant 3.200000e+01 : f32
    %12 = vector.broadcast %cst_7 : f32 to vector<16x1xf32>
    %13 = arith.divf %11, %12 : vector<16x1xf32>
    %cst_8 = arith.constant 9.99999974E-6 : f32
    %14 = vector.broadcast %cst_8 : f32 to vector<16x1xf32>
    %15 = arith.addf %13, %14 : vector<16x1xf32>
    %16 = math.rsqrt %15 : vector<16x1xf32>
    %17 = vector.broadcast %16 : vector<16x1xf32> to vector<16x32xf32>
    %18 = arith.mulf %8, %17 : vector<16x32xf32>
    %19 = vector.broadcast %1 : vector<1x32xf32> to vector<16x32xf32>
    %20 = arith.mulf %18, %19 : vector<16x32xf32>
    %21 = vector.broadcast %2 : vector<1x32xf32> to vector<16x32xf32>
    %22 = arith.addf %20, %21 : vector<16x32xf32>
    %23 = arith.truncf %22 : vector<16x32xf32> to vector<16x32xbf16>
    %c0_9 = arith.constant 0 : index
    %c0_10 = arith.constant 0 : index
    %24 = vector.load %arg5[%c0_9, %c0_10] : memref<32x96xbf16, #tpu.memory_space<vmem>>, vector<32x96xbf16>
    %cst_11 = arith.constant dense<0.000000e+00> : vector<16x96xf32>
    %25 = tpu.matmul %23, %24, %cst_11 {dimension_numbers = #tpu.dot_dimension_numbers<[1], [0], [0], [1], [0, 0, 1, 1], [], []>} : vector<16x32xbf16>, vector<32x96xbf16>, vector<16x96xf32> -> vector<16x96xf32>
    %c0_12 = arith.constant 0 : index
    %c0_13 = arith.constant 0 : index
    %26 = vector.load %arg6[%c0_12, %c0_13] : memref<1x96xf32, #tpu.memory_space<vmem>>, vector<1x96xf32>
    %27 = vector.broadcast %26 : vector<1x96xf32> to vector<16x96xf32>
    %28 = arith.addf %25, %27 : vector<16x96xf32>
    %c0_14 = arith.constant 0 : index
    %c0_15 = arith.constant 0 : index
    %29 = vector.load %arg7[%c0_14, %c0_15] : memref<16x96xf32, #tpu.memory_space<vmem>>, vector<16x96xf32>
    tpu.vector_store %arg7[%c0_14, %c0_15], %28 {strides = array<i32>} : memref<16x96xf32, #tpu.memory_space<vmem>>, vector<16x96xf32>,
    return
  }
  func.func @transform_0(%arg0: i32, %arg1: i32) -> (i32, i32) {
    %c0_i32 = arith.constant 0 : i32
    %c0_i32_0 = arith.constant 0 : i32
    return %arg0, %c0_i32 : i32, i32
  }
  func.func @transform_1(%arg0: i32, %arg1: i32) -> (i32, i32) {
    %c0_i32 = arith.constant 0 : i32
    %c0_i32_0 = arith.constant 0 : i32
    %c0_i32_1 = arith.constant 0 : i32
    return %c0_i32, %c0_i32_0 : i32, i32
  }
  func.func @transform_2(%arg0: i32, %arg1: i32) -> (i32, i32) {
    %c0_i32 = arith.constant 0 : i32
    %c0_i32_0 = arith.constant 0 : i32
    %c0_i32_1 = arith.constant 0 : i32
    return %c0_i32, %c0_i32_0 : i32, i32
  }
  func.func @transform_3(%arg0: i32, %arg1: i32) -> (i32, i32) {
    %c0_i32 = arith.constant 0 : i32
    %c0_i32_0 = arith.constant 0 : i32
    return %c0_i32, %arg1 : i32, i32
  }
  func.func @transform_4(%arg0: i32, %arg1: i32) -> (i32, i32) {
    %c0_i32 = arith.constant 0 : i32
    %c0_i32_0 = arith.constant 0 : i32
    return %c0_i32, %arg1 : i32, i32
  }
  func.func @transform_5(%arg0: i32, %arg1: i32) -> (i32, i32) {
    %c0_i32 = arith.constant 0 : i32
    return %arg0, %arg1 : i32, i32
  }
}

</mosaic_0001>

<llo_original>
// kernel: tpu_custom_call.1
$region0: #{tpu_custom_call.1}
  #allocation0 [shape = 'u32[]', space=smem, size = 0x4, offset = 0x4, fixed_abs, tag = 'smem constant byte address 0x4 - core index']
  #allocation1 [shape = 'u32[144,128]{1,0:T(1,128)}', space=vmem, size = 0x12000, scoped, tag = 'internal scratch']
  %s0 = inlined_call_operand.hbm [shape: f32[16,32], index: 0, kind: input, shape index: {}]
  %s1 = inlined_call_operand.vmem [shape: f32[1,32], index: 1, kind: input, shape index: {}]
  %s2 = inlined_call_operand.vmem [shape: f32[1,32], index: 2, kind: input, shape index: {}]
  %s3 = inlined_call_operand.hbm [shape: bf16[32,96], index: 3, kind: input, shape index: {}]
  %s4 = inlined_call_operand.vmem [shape: f32[1,96], index: 4, kind: input, shape index: {}]
  %s5 = inlined_call_operand.hbm [shape: f32[16,96], index: 5, kind: output, shape index: {}]
  %s6 = sld [smem:[#allocation0]]
  $region38: #{tpu_custom_call.1} parent=0
    _
  %s8 = ssub.s32 1, %s6
  %s9 = scalar_select 0, %s8, %s6
  $region1: #{tpu_custom_call.1} parent=0
    #allocation2 [shape = 'u8[8192]{0}', space=vmem, size = 0x2000, scoped, tag = 'input window, operand 0, single buffered']
    #allocation3 [shape = 's32[1]{0}', space=sflag, size = 0x4, scoped, tag = 'scoped memory for tpu_custom_call.1']
    #allocation4 [shape = 's32[1]{0}', space=sflag, size = 0x4, scoped, tag = 'scoped memory for tpu_custom_call.1']
    #allocation5 [shape = 'u8[8192]{0}', space=vmem, size = 0x2000, scoped, tag = 'input window, operand 3, single buffered']
    #allocation6 [shape = 's32[1]{0}', space=sflag, size = 0x4, scoped, tag = 'scoped memory for tpu_custom_call.1']
    #allocation7 [shape = 'u8[8192]{0}', space=vmem, size = 0x2000, scoped, tag = 'output window, operand 0, single buffered']
    %10 = vsyncpa [#allocation3], 0
    %11 = vsyncpa [#allocation6], 0
    %12 = vsyncpa [#allocation4], 0
    // Predicated region
    $region2: #{tpu_custom_call.1} parent=1 // pred_check
      _
    $region3: #{tpu_custom_call.1} parent=1 // pred_check_branch
      %14 = sbr.rel (0) target = $region5
    $region4: #{tpu_custom_call.1} parent=1 // pred_region
      %s16 = ssub.s32 256, 256
      %17 = vsyncadd [#allocation3], %s16
      %s18 = sshll.u32 [#allocation2], 4
      %s19 = int_to_ptr.vmem [resolvable:$true] %s18
      %24 = dma.hbm_to_vmem [thread:$0]  %s0, 256, %s19, [#allocation3], 128, 128, 8
    $region5: #{tpu_custom_call.1} parent=1 // pred_fallthru
      _
    // Predicated region
    $region6: #{tpu_custom_call.1} parent=1 // pred_check
      _
    $region7: #{tpu_custom_call.1} parent=1 // pred_check_branch
      %26 = sbr.rel (0) target = $region9
    $region8: #{tpu_custom_call.1} parent=1 // pred_region
      _
    $region9: #{tpu_custom_call.1} parent=1 // pred_fallthru
      _
    // Predicated region
    $region10: #{tpu_custom_call.1} parent=1 // pred_check
      _
    $region11: #{tpu_custom_call.1} parent=1 // pred_check_branch
      %28 = sbr.rel (0) target = $region13
    $region12: #{tpu_custom_call.1} parent=1 // pred_region
      _
    $region13: #{tpu_custom_call.1} parent=1 // pred_fallthru
      _
    // Predicated region
    $region14: #{tpu_custom_call.1} parent=1 // pred_check
      _
    $region15: #{tpu_custom_call.1} parent=1 // pred_check_branch
      %30 = sbr.rel (0) target = $region17
    $region16: #{tpu_custom_call.1} parent=1 // pred_region
      %s32 = ssub.s32 256, 256
      %33 = vsyncadd [#allocation6], %s32
      %s34 = sshll.u32 [#allocation5], 4
      %s35 = int_to_ptr.vmem [resolvable:$true] %s34
      %40 = dma.hbm_to_vmem [thread:$0]  %s3, 256, %s35, [#allocation6], 64, 64, 4
    $region17: #{tpu_custom_call.1} parent=1 // pred_fallthru
      _
    // Predicated region
    $region18: #{tpu_custom_call.1} parent=1 // pred_check
      _
    $region19: #{tpu_custom_call.1} parent=1 // pred_check_branch
      %42 = sbr.rel (0) target = $region21
    $region20: #{tpu_custom_call.1} parent=1 // pred_region
      _
    $region21: #{tpu_custom_call.1} parent=1 // pred_fallthru
      _
    // Predicated region
    $region22: #{tpu_custom_call.1} parent=1 // pred_check
      _
    $region23: #{tpu_custom_call.1} parent=1 // pred_check_branch
      %44 = sbr.rel (0) target = $region25
    $region24: #{tpu_custom_call.1} parent=1 // pred_region
      %45 = dma.done [#allocation3], 256
    $region25: #{tpu_custom_call.1} parent=1 // pred_fallthru
      _
    // Predicated region
    $region26: #{tpu_custom_call.1} parent=1 // pred_check
      _
    $region27: #{tpu_custom_call.1} parent=1 // pred_check_branch
      %47 = sbr.rel (0) target = $region29
    $region28: #{tpu_custom_call.1} parent=1 // pred_region
      %48 = dma.done [#allocation6], 256
    $region29: #{tpu_custom_call.1} parent=1 // pred_fallthru
      _
    %v50 = vld [vmem:[#allocation2] sm:$0xff]
    %v51 = vld [vmem:[#allocation2 + $0x8] sm:$0xff]
    %v52 = vld [vmem:[%s1] sm:$0x1]
    %v53 = vld [vmem:[%s2] sm:$0x1]
    %vm54 = vcmask 261120
    %v55 = vsel %vm54, %v50, 0.0
    %56 = vadd.xlane.f32.xlu0 %v55
    %v57 = vpop.xlane.xlu0 %56
    %v58 = vsel %vm54, %v51, 0.0
    %59 = vadd.xlane.f32.xlu0 %v58
    %v60 = vpop.xlane.xlu0 %59
    %v61 = vrcp.pop 32.0
    %v62 = vmul.f32 %v57, %v61
    %v63 = vmul.f32 %v60, %v61
    %v64 = vsub.f32 %v50, %v62
    %v65 = vsub.f32 %v51, %v63
    %v66 = vmul.f32 %v64, %v64
    %v67 = vmul.f32 %v65, %v65
    %v68 = vsel %vm54, %v66, 0.0
    %69 = vadd.xlane.f32.xlu0 %v68
    %v70 = vpop.xlane.xlu0 %69
    %v71 = vsel %vm54, %v67, 0.0
    %72 = vadd.xlane.f32.xlu0 %v71
    %v73 = vpop.xlane.xlu0 %72
    %v74 = vmul.f32 %v70, %v61
    %v75 = vmul.f32 %v73, %v61
    %v76 = vadd.f32 %v74, 1e-05
    %v77 = vadd.f32 %v75, 1e-05
    %v78 = vrsqrt.pop %v76
    %v79 = vrsqrt.pop %v77
    %v80 = vmul.f32 %v64, %v78
    %v81 = vmul.f32 %v65, %v79
    %v83 = vlaneseq
    %v84 = vshrl.u32 %v83, 7
    %v85 = vsub.s32 0, %v84
    %v86 = vrot.slane %v52, %v85
    %v88 = vmul.f32 %v80, %v86
    %v89 = vmul.f32 %v81, %v86
    %v91 = vlaneseq
    %v92 = vshrl.u32 %v91, 7
    %v93 = vsub.s32 0, %v92
    %v94 = vrot.slane %v53, %v93
    %v96 = vadd.f32 %v88, %v94
    %v97 = vadd.f32 %v89, %v94
    %v98 = vpack.c.bf16 %v97, %v96
    %v99 = vld [vmem:[#allocation5] sm:$0xf]
    %v100 = vld [vmem:[#allocation5 + $0x4] sm:$0xf]
    %v101 = vld [vmem:[#allocation5 + $0x8] sm:$0xf]
    %v102 = vld [vmem:[#allocation5 + $0xc] sm:$0xf]
    %v103 = vld [vmem:[%s4] sm:$0x1]
    %v105 = vlaneseq
    %v106 = vshrl.u32 %v105, 7
    %v107 = vsub.s32 0, %v106
    %v108 = vrot.slane %v103, %v107
    %v114 = vunpack.c.l.b16 %v99
    %v115 = vunpack.c.l.b16 %v100
    %v116 = vunpack.c.l.b16 %v101
    %v117 = vunpack.c.l.b16 %v102
    %v118 = vpack.c.b16 %v115, %v114
    %v119 = vpack.c.b16 %v117, %v116
    %v123 = vsel %vm54, %v98, 0
    %125 = vmatprep.subr.bf16.mxu0 0
    %126 = vmatpush1.bf16.msra.mxu0 0
    %127 = vmatprep.subr.bf16.mxu0 0
    %128 = vmatpush1.bf16.msra.mxu0 0
    %129 = vmatprep.subr.bf16.mxu0 0
    %130 = vmatpush1.bf16.msra.mxu0 0
    %131 = vmatprep.subr.bf16.mxu0 0
    %132 = vmatpush1.bf16.msra.mxu0 0
    %133 = vmatprep.subr.bf16.mxu0 0
    %134 = vmatpush1.bf16.msra.mxu0 0
    %135 = vmatprep.subr.bf16.mxu0 0
    %136 = vmatpush1.bf16.msra.mxu0 0
    %137 = vmatprep.subr.bf16.mxu0 0
    %138 = vmatpush1.bf16.msra.mxu0 %v119
    %139 = vmatprep.subr.bf16.mxu0 0
    %140 = vmatpush1.bf16.msra.mxu0 %v118
    %141 = vmatprep.subr.bf16.mxu0 0
    %142 = vmatpush2.bf16.msra.mxu0 0
    %143 = vmatprep.subr.bf16.mxu0 0
    %144 = vmatpush2.bf16.msra.mxu0 0
    %145 = vmatprep.subr.bf16.mxu0 0
    %146 = vmatpush2.bf16.msra.mxu0 0
    %147 = vmatprep.subr.bf16.mxu0 0
    %148 = vmatpush2.bf16.msra.mxu0 0
    %149 = vmatprep.subr.bf16.mxu0 0
    %150 = vmatpush2.bf16.msra.mxu0 0
    %151 = vmatprep.subr.bf16.mxu0 0
    %152 = vmatpush2.bf16.msra.mxu0 0
    %153 = vmatprep.subr.bf16.mxu0 0
    %154 = vmatpush2.bf16.msra.mxu0 0
    %155 = vmatprep.subr.bf16.mxu0 0
    %156 = vmatpush2.bf16.msra.mxu0 0
    %157 = vmatprep.mubr.bf16.mxu0 0
    %158 = vmatmul.mubr.bf16.gmra.mxu0 %v123
    %v159 = vpop.f32.mrf.mxu0
    %v160 = vadd.f32 %v108, %v159
    %v161 = vpop.f32.mrf.mxu0
    %v162 = vpop.f32.mrf.mxu0
    %v163 = vadd.f32 %v108, %v162
    %v164 = vpop.f32.mrf.mxu0
    %165 = vdwg.mxu0
    %vm166 = vcmask 785408
    %167 = vst.msk [vmem:[#allocation7] sm:$0xff] %vm166, %v160
    %168 = vst.msk [vmem:[#allocation7 + $0x8] sm:$0xff] %vm166, %v163
    // Predicated region
    $region30: #{tpu_custom_call.1} parent=1 // pred_check
      _
    $region31: #{tpu_custom_call.1} parent=1 // pred_check_branch
      %170 = sbr.rel (0) target = $region33
    $region32: #{tpu_custom_call.1} parent=1 // pred_region
      %s172 = ssub.s32 256, 256
      %173 = vsyncadd [#allocation4], %s172
      %s174 = sshll.u32 [#allocation7], 4
      %s175 = int_to_ptr.vmem [resolvable:$true] %s174
      %180 = dma.vmem_to_hbm [thread:$0]  %s175, 256, %s5, [#allocation4], 128, 128, 8
    $region33: #{tpu_custom_call.1} parent=1 // pred_fallthru
      _
    // Predicated region
    $region34: #{tpu_custom_call.1} parent=1 // pred_check
      _
    $region35: #{tpu_custom_call.1} parent=1 // pred_check_branch
      %182 = sbr.rel (0) target = $region37
    $region36: #{tpu_custom_call.1} parent=1 // pred_region
      %183 = dma.done [#allocation4], 256
    $region37: #{tpu_custom_call.1} parent=1 // pred_fallthru
      _
    %184 = vsyncpa [#allocation3], 1
    %185 = vsyncpa [#allocation6], 1
    %186 = vsyncpa [#allocation4], 1

</llo_original>
